<compile_context>
chip_gen: v6e
topology: v6e:2x2x1
jax: 0.10.0
libtpu: 0.0.40
codegen_flags: <defaults>
</compile_context>

<pallas_src>
import jax
import jax.numpy as jnp
from jax import lax
from jax.experimental import pallas as pl
from jax.experimental.pallas import tpu as pltpu

_EPS = 1e-5


def global_kernel(xA_ref, xB_ref, w1_ref, w2_ref, params_ref, out_ref):
    # xA_ref: (N, C_in*H, W)   Conv1 contraction view (free reshape of NCHW)
    # xB_ref: (N, C_in*W, H)   Conv2 contraction view
    # w1_ref: (C_out, C_in*H)  w2_ref: (C_out, C_in*W)
    # params_ref: (C_out, 4) = [b1, b2, gamma, beta]
    # out_ref: (N, C_out, H*W)  lane-dense output slab (NCHW after free reshape)
    N, C_out, HW = out_ref.shape
    H = xB_ref.shape[2]
    W = xA_ref.shape[2]
    f32 = jnp.float32

    b1 = params_ref[:, 0:1]
    b2 = params_ref[:, 1:2]
    gamma = params_ref[:, 2:3]
    beta = params_ref[:, 3:4]
    w1 = w1_ref[...]
    w2 = w2_ref[...]

    # ---- pass 1: per-batch convolutions (MXU dots) + analytic BN moments ----
    c1_all, c2_all = [], []
    sum_y = jnp.zeros((C_out, 1), f32)
    sum_y2 = jnp.zeros((C_out, 1), f32)
    for n in range(N):                                   # static unroll, N tiny
        c1n = jnp.dot(w1, xA_ref[n], preferred_element_type=f32) + b1   # (C_out, W)
        c2n = jnp.dot(w2, xB_ref[n], preferred_element_type=f32) + b2   # (C_out, H)
        c1_all.append(c1n)
        c2_all.append(c2n)
        s1 = jnp.sum(c1n, axis=1, keepdims=True)         # sum_w c1     (C_out,1)
        s2 = jnp.sum(c2n, axis=1, keepdims=True)         # sum_h c2
        q1 = jnp.sum(c1n * c1n, axis=1, keepdims=True)   # sum_w c1^2
        q2 = jnp.sum(c2n * c2n, axis=1, keepdims=True)   # sum_h c2^2
        sum_y = sum_y + s1 * s2                          # sum_{h,w} y  (separable)
        sum_y2 = sum_y2 + q1 * q2                        # sum_{h,w} y^2

    # ---- training-mode BatchNorm statistics (analytic, y never materialized)
    inv_cnt = 1.0 / float(N * HW)        # true global count (full-array block)
    mean = sum_y * inv_cnt                                # (C_out, 1)
    var = jnp.maximum(sum_y2 * inv_cnt - mean * mean, 0.0)  # biased batch var
    scale = gamma * lax.rsqrt(var + _EPS)                 # (C_out, 1)
    shift = beta - mean * scale                           # (C_out, 1)

    # ---- in-kernel one-hot expansion matrices (iota + compare, zero HBM) ----
    # RH[h', h*W + w] = 1 iff h' == h   (repeat-each-element-W-times pattern)
    lane_h = lax.broadcasted_iota(jnp.int32, (H, HW), 1)
    row_h = lax.broadcasted_iota(jnp.int32, (H, HW), 0)
    RH = jnp.where((lane_h >= row_h * W) & (lane_h < (row_h + 1) * W), 1.0, 0.0)
    # RW[w', h*W + w] = 1 iff w' == w   (tile-H-times pattern)
    lane_w = lax.broadcasted_iota(jnp.int32, (W, HW), 1)
    row_w = lax.broadcasted_iota(jnp.int32, (W, HW), 0)
    if W & (W - 1) == 0:                 # power-of-two W: cheap bitwise modulo
        wmod = lane_w & (W - 1)
    else:
        wmod = lane_w % W
    RW = jnp.where(wmod == row_w, 1.0, 0.0)

    # ---- pass 2: fused materialize + normalize + ReLU, lane-dense stores ----
    for n in range(N):
        c2s = c2_all[n] * scale          # fold gamma/rsqrt into the small factor
        b_exp = jnp.dot(c2s, RH, preferred_element_type=f32)        # (C_out, HW)
        a_exp = jnp.dot(c1_all[n], RW, preferred_element_type=f32)  # (C_out, HW)
        out_ref[n] = jnp.maximum(b_exp * a_exp + shift, 0.0)        # 256-lane store


def global_forward(x, w1, b1, w2, b2, gamma, beta):
    """x: (N, C_in, H, W) NCHW; w1: (C_out, C_in, H, 1); w2: (C_out, C_in, 1, W)."""
    N, C_in, H, W = x.shape
    C_out = w1.shape[0]
    f32 = jnp.float32

    # Conv1 view is a free metadata reshape of NCHW; Conv2 view is the single
    # wrapper relayout left (its contraction needs H in the lane dim).
    xA = x.reshape(N, C_in * H, W).astype(f32)                   # (N, C_in*H, W)
    xB = jnp.swapaxes(x, 2, 3).reshape(N, C_in * W, H).astype(f32)  # (N, C_in*W, H)
    w1f = w1.reshape(C_out, C_in * H).astype(f32)
    w2f = w2.reshape(C_out, C_in * W).astype(f32)
    params = jnp.stack([b1, b2, gamma, beta], axis=1).astype(f32)   # (C_out, 4)

    vmem = pltpu.MemorySpace.VMEM
    out = pl.pallas_call(
        global_kernel,
        out_shape=jax.ShapeDtypeStruct((N, C_out, H * W), jnp.float32),
        in_specs=[pl.BlockSpec(memory_space=vmem)] * 5,
        out_specs=pl.BlockSpec(memory_space=vmem),
    )(xA, xB, w1f, w2f, params)

    # (N, C_out, H*W) -> (N, C_out, H, W): trailing split, no data movement.
    return out.reshape(N, C_out, H, W)


# TODO(synk): nn.BatchNorm2d's running_mean/running_var side-effect updates
# (training-state bookkeeping) are not emitted; the returned tensor matches
# PyTorch's training-mode forward exactly.


def reference_forward(x, w1, b1, w2, b2, gamma, beta, eps=_EPS):
    """Pure-JAX mirror of the PyTorch forward (training-mode BatchNorm)."""
    dn = ("NCHW", "OIHW", "NCHW")
    hp = lax.Precision.HIGHEST
    c1 = lax.conv_general_dilated(x, w1, (1, 1), "VALID", dimension_numbers=dn,
                                  precision=hp) + b1.reshape(1, -1, 1, 1)
    c2 = lax.conv_general_dilated(x, w2, (1, 1), "VALID", dimension_numbers=dn,
                                  precision=hp) + b2.reshape(1, -1, 1, 1)
    y = jnp.matmul(c2, c1, precision=hp)                            # (N, C_out, H, W)
    mean = y.mean(axis=(0, 2, 3), keepdims=True)
    var = ((y - mean) ** 2).mean(axis=(0, 2, 3), keepdims=True)
    yn = (y - mean) / jnp.sqrt(var + eps)
    return jnp.maximum(gamma.reshape(1, -1, 1, 1) * yn + beta.reshape(1, -1, 1, 1), 0.0)


if __name__ == "__main__":
    N, C_in, C_out, H, W = 2, 4, 8, 16, 16

    key = jax.random.PRNGKey(0)
    kx, kw1, kb1, kw2, kb2 = jax.random.split(key, 5)

    x = jax.random.normal(kx, (N, C_in, H, W), dtype=jnp.float32)

    # Deterministic Conv2d-style init (uniform in +/- 1/sqrt(fan_in)).
    fan1 = C_in * H
    fan2 = C_in * W
    w1 = jax.random.uniform(kw1, (C_out, C_in, H, 1), jnp.float32,
                            -1.0 / fan1 ** 0.5, 1.0 / fan1 ** 0.5)
    b1 = jax.random.uniform(kb1, (C_out,), jnp.float32,
                            -1.0 / fan1 ** 0.5, 1.0 / fan1 ** 0.5)
    w2 = jax.random.uniform(kw2, (C_out, C_in, 1, W), jnp.float32,
                            -1.0 / fan2 ** 0.5, 1.0 / fan2 ** 0.5)
    b2 = jax.random.uniform(kb2, (C_out,), jnp.float32,
                            -1.0 / fan2 ** 0.5, 1.0 / fan2 ** 0.5)
    gamma = jnp.ones((C_out,), jnp.float32)   # BatchNorm default weight
    beta = jnp.zeros((C_out,), jnp.float32)   # BatchNorm default bias

    out = jax.block_until_ready(global_forward(x, w1, b1, w2, b2, gamma, beta))
    ref = jax.block_until_ready(reference_forward(x, w1, b1, w2, b2, gamma, beta))

    assert out.shape == (N, C_out, H, W)
    err = float(jnp.max(jnp.abs(out - ref)))
    assert jnp.allclose(out, ref, atol=1e-3, rtol=1e-3), f"max abs err = {err}"

    print("KERNEL_OK")
</pallas_src>

<mosaic_0001>
module attributes {stable_mosaic.version = 11 : i64} {
  func.func @global_kernel(%arg0: memref<2x64x16xf32, #tpu.memory_space<vmem>>, %arg1: memref<2x64x16xf32, #tpu.memory_space<vmem>>, %arg2: memref<8x64xf32, #tpu.memory_space<vmem>>, %arg3: memref<8x64xf32, #tpu.memory_space<vmem>>, %arg4: memref<8x4xf32, #tpu.memory_space<vmem>>, %arg5: memref<2x8x256xf32, #tpu.memory_space<vmem>>) attributes {dimension_semantics = [], scalar_prefetch = 0 : i64, scratch_operands = 0 : i64, tpu.core_type = #tpu.core_type<tc>} {
    %c0 = arith.constant 0 : index
    %c0_0 = arith.constant 0 : index
    %0 = vector.load %arg4[%c0, %c0_0] : memref<8x4xf32, #tpu.memory_space<vmem>>, vector<8x1xf32>
    %c0_1 = arith.constant 0 : index
    %c1 = arith.constant 1 : index
    %1 = vector.load %arg4[%c0_1, %c1] : memref<8x4xf32, #tpu.memory_space<vmem>>, vector<8x1xf32>
    %c0_2 = arith.constant 0 : index
    %c2 = arith.constant 2 : index
    %2 = vector.load %arg4[%c0_2, %c2] : memref<8x4xf32, #tpu.memory_space<vmem>>, vector<8x1xf32>
    %c0_3 = arith.constant 0 : index
    %c3 = arith.constant 3 : index
    %3 = vector.load %arg4[%c0_3, %c3] : memref<8x4xf32, #tpu.memory_space<vmem>>, vector<8x1xf32>
    %c0_4 = arith.constant 0 : index
    %c0_5 = arith.constant 0 : index
    %4 = vector.load %arg2[%c0_4, %c0_5] : memref<8x64xf32, #tpu.memory_space<vmem>>, vector<8x64xf32>
    %c0_6 = arith.constant 0 : index
    %c0_7 = arith.constant 0 : index
    %5 = vector.load %arg3[%c0_6, %c0_7] : memref<8x64xf32, #tpu.memory_space<vmem>>, vector<8x64xf32>
    %cst = arith.constant 0.000000e+00 : f32
    %6 = vector.broadcast %cst : f32 to vector<8x1xf32>
    %cst_8 = arith.constant 0.000000e+00 : f32
    %7 = vector.broadcast %cst_8 : f32 to vector<8x1xf32>
    %c0_9 = arith.constant 0 : index
    %c0_10 = arith.constant 0 : index
    %c0_11 = arith.constant 0 : index
    %8 = vector.load %arg0[%c0_9, %c0_10, %c0_11] : memref<2x64x16xf32, #tpu.memory_space<vmem>>, vector<1x64x16xf32>
    %9 = vector.shape_cast %8 : vector<1x64x16xf32> to vector<64x16xf32>
    %cst_12 = arith.constant dense<0.000000e+00> : vector<8x16xf32>
    %10 = tpu.matmul %4, %9, %cst_12 {dimension_numbers = #tpu.dot_dimension_numbers<[1], [0], [0], [1], [0, 0, 1, 1], [], []>} : vector<8x64xf32>, vector<64x16xf32>, vector<8x16xf32> -> vector<8x16xf32>
    %11 = vector.broadcast %0 : vector<8x1xf32> to vector<8x16xf32>
    %12 = arith.addf %10, %11 : vector<8x16xf32>
    %c0_13 = arith.constant 0 : index
    %c0_14 = arith.constant 0 : index
    %c0_15 = arith.constant 0 : index
    %13 = vector.load %arg1[%c0_13, %c0_14, %c0_15] : memref<2x64x16xf32, #tpu.memory_space<vmem>>, vector<1x64x16xf32>
    %14 = vector.shape_cast %13 : vector<1x64x16xf32> to vector<64x16xf32>
    %cst_16 = arith.constant dense<0.000000e+00> : vector<8x16xf32>
    %15 = tpu.matmul %5, %14, %cst_16 {dimension_numbers = #tpu.dot_dimension_numbers<[1], [0], [0], [1], [0, 0, 1, 1], [], []>} : vector<8x64xf32>, vector<64x16xf32>, vector<8x16xf32> -> vector<8x16xf32>
    %16 = vector.broadcast %1 : vector<8x1xf32> to vector<8x16xf32>
    %17 = arith.addf %15, %16 : vector<8x16xf32>
    %cst_17 = arith.constant dense<0.000000e+00> : vector<8xf32>
    %18 = vector.multi_reduction <add>, %12, %cst_17 [1] : vector<8x16xf32> to vector<8xf32>
    %19 = vector.shape_cast %18 : vector<8xf32> to vector<8x1xf32>
    %cst_18 = arith.constant dense<0.000000e+00> : vector<8xf32>
    %20 = vector.multi_reduction <add>, %17, %cst_18 [1] : vector<8x16xf32> to vector<8xf32>
    %21 = vector.shape_cast %20 : vector<8xf32> to vector<8x1xf32>
    %22 = arith.mulf %12, %12 : vector<8x16xf32>
    %cst_19 = arith.constant dense<0.000000e+00> : vector<8xf32>
    %23 = vector.multi_reduction <add>, %22, %cst_19 [1] : vector<8x16xf32> to vector<8xf32>
    %24 = vector.shape_cast %23 : vector<8xf32> to vector<8x1xf32>
    %25 = arith.mulf %17, %17 : vector<8x16xf32>
    %cst_20 = arith.constant dense<0.000000e+00> : vector<8xf32>
    %26 = vector.multi_reduction <add>, %25, %cst_20 [1] : vector<8x16xf32> to vector<8xf32>
    %27 = vector.shape_cast %26 : vector<8xf32> to vector<8x1xf32>
    %28 = arith.mulf %19, %21 : vector<8x1xf32>
    %29 = arith.addf %6, %28 : vector<8x1xf32>
    %30 = arith.mulf %24, %27 : vector<8x1xf32>
    %31 = arith.addf %7, %30 : vector<8x1xf32>
    %c1_21 = arith.constant 1 : index
    %c0_22 = arith.constant 0 : index
    %c0_23 = arith.constant 0 : index
    %32 = vector.load %arg0[%c1_21, %c0_22, %c0_23] : memref<2x64x16xf32, #tpu.memory_space<vmem>>, vector<1x64x16xf32>
    %33 = vector.shape_cast %32 : vector<1x64x16xf32> to vector<64x16xf32>
    %cst_24 = arith.constant dense<0.000000e+00> : vector<8x16xf32>
    %34 = tpu.matmul %4, %33, %cst_24 {dimension_numbers = #tpu.dot_dimension_numbers<[1], [0], [0], [1], [0, 0, 1, 1], [], []>} : vector<8x64xf32>, vector<64x16xf32>, vector<8x16xf32> -> vector<8x16xf32>
    %35 = vector.broadcast %0 : vector<8x1xf32> to vector<8x16xf32>
    %36 = arith.addf %34, %35 : vector<8x16xf32>
    %c1_25 = arith.constant 1 : index
    %c0_26 = arith.constant 0 : index
    %c0_27 = arith.constant 0 : index
    %37 = vector.load %arg1[%c1_25, %c0_26, %c0_27] : memref<2x64x16xf32, #tpu.memory_space<vmem>>, vector<1x64x16xf32>
    %38 = vector.shape_cast %37 : vector<1x64x16xf32> to vector<64x16xf32>
    %cst_28 = arith.constant dense<0.000000e+00> : vector<8x16xf32>
    %39 = tpu.matmul %5, %38, %cst_28 {dimension_numbers = #tpu.dot_dimension_numbers<[1], [0], [0], [1], [0, 0, 1, 1], [], []>} : vector<8x64xf32>, vector<64x16xf32>, vector<8x16xf32> -> vector<8x16xf32>
    %40 = vector.broadcast %1 : vector<8x1xf32> to vector<8x16xf32>
    %41 = arith.addf %39, %40 : vector<8x16xf32>
    %cst_29 = arith.constant dense<0.000000e+00> : vector<8xf32>
    %42 = vector.multi_reduction <add>, %36, %cst_29 [1] : vector<8x16xf32> to vector<8xf32>
    %43 = vector.shape_cast %42 : vector<8xf32> to vector<8x1xf32>
    %cst_30 = arith.constant dense<0.000000e+00> : vector<8xf32>
    %44 = vector.multi_reduction <add>, %41, %cst_30 [1] : vector<8x16xf32> to vector<8xf32>
    %45 = vector.shape_cast %44 : vector<8xf32> to vector<8x1xf32>
    %46 = arith.mulf %36, %36 : vector<8x16xf32>
    %cst_31 = arith.constant dense<0.000000e+00> : vector<8xf32>
    %47 = vector.multi_reduction <add>, %46, %cst_31 [1] : vector<8x16xf32> to vector<8xf32>
    %48 = vector.shape_cast %47 : vector<8xf32> to vector<8x1xf32>
    %49 = arith.mulf %41, %41 : vector<8x16xf32>
    %cst_32 = arith.constant dense<0.000000e+00> : vector<8xf32>
    %50 = vector.multi_reduction <add>, %49, %cst_32 [1] : vector<8x16xf32> to vector<8xf32>
    %51 = vector.shape_cast %50 : vector<8xf32> to vector<8x1xf32>
    %52 = arith.mulf %43, %45 : vector<8x1xf32>
    %53 = arith.addf %29, %52 : vector<8x1xf32>
    %54 = arith.mulf %48, %51 : vector<8x1xf32>
    %55 = arith.addf %31, %54 : vector<8x1xf32>
    %cst_33 = arith.constant 0.001953125 : f32
    %56 = vector.broadcast %cst_33 : f32 to vector<8x1xf32>
    %57 = arith.mulf %53, %56 : vector<8x1xf32>
    %cst_34 = arith.constant 0.001953125 : f32
    %58 = vector.broadcast %cst_34 : f32 to vector<8x1xf32>
    %59 = arith.mulf %55, %58 : vector<8x1xf32>
    %60 = arith.mulf %57, %57 : vector<8x1xf32>
    %61 = arith.subf %59, %60 : vector<8x1xf32>
    %cst_35 = arith.constant 0.000000e+00 : f32
    %62 = vector.broadcast %cst_35 : f32 to vector<8x1xf32>
    %63 = arith.maximumf %61, %62 : vector<8x1xf32>
    %cst_36 = arith.constant 9.99999974E-6 : f32
    %64 = vector.broadcast %cst_36 : f32 to vector<8x1xf32>
    %65 = arith.addf %63, %64 : vector<8x1xf32>
    %66 = math.rsqrt %65 : vector<8x1xf32>
    %67 = arith.mulf %2, %66 : vector<8x1xf32>
    %68 = arith.mulf %57, %67 : vector<8x1xf32>
    %69 = arith.subf %3, %68 : vector<8x1xf32>
    %70 = tpu.iota {dimensions = array<i32: 1>} : vector<16x256xi32>
    %71 = tpu.iota {dimensions = array<i32: 0>} : vector<16x256xi32>
    %c16_i32 = arith.constant 16 : i32
    %72 = vector.broadcast %c16_i32 : i32 to vector<16x256xi32>
    %73 = arith.muli %71, %72 : vector<16x256xi32>
    %74 = arith.cmpi sge, %70, %73 : vector<16x256xi32>
    %c1_i32 = arith.constant 1 : i32
    %75 = vector.broadcast %c1_i32 : i32 to vector<16x256xi32>
    %76 = arith.addi %71, %75 : vector<16x256xi32>
    %c16_i32_37 = arith.constant 16 : i32
    %77 = vector.broadcast %c16_i32_37 : i32 to vector<16x256xi32>
    %78 = arith.muli %76, %77 : vector<16x256xi32>
    %79 = arith.cmpi slt, %70, %78 : vector<16x256xi32>
    %80 = arith.andi %74, %79 : vector<16x256xi1>
    %cst_38 = arith.constant 1.000000e+00 : f32
    %cst_39 = arith.constant 0.000000e+00 : f32
    %81 = vector.broadcast %cst_38 : f32 to vector<16x256xf32>
    %82 = vector.broadcast %cst_39 : f32 to vector<16x256xf32>
    %83 = arith.select %80, %81, %82 : vector<16x256xi1>, vector<16x256xf32>
    %84 = tpu.iota {dimensions = array<i32: 1>} : vector<16x256xi32>
    %85 = tpu.iota {dimensions = array<i32: 0>} : vector<16x256xi32>
    %c15_i32 = arith.constant 15 : i32
    %86 = vector.broadcast %c15_i32 : i32 to vector<16x256xi32>
    %87 = arith.andi %84, %86 : vector<16x256xi32>
    %88 = arith.cmpi eq, %87, %85 : vector<16x256xi32>
    %cst_40 = arith.constant 1.000000e+00 : f32
    %cst_41 = arith.constant 0.000000e+00 : f32
    %89 = vector.broadcast %cst_40 : f32 to vector<16x256xf32>
    %90 = vector.broadcast %cst_41 : f32 to vector<16x256xf32>
    %91 = arith.select %88, %89, %90 : vector<16x256xi1>, vector<16x256xf32>
    %92 = vector.broadcast %67 : vector<8x1xf32> to vector<8x16xf32>
    %93 = arith.mulf %17, %92 : vector<8x16xf32>
    %cst_42 = arith.constant dense<0.000000e+00> : vector<8x256xf32>
    %94 = tpu.matmul %93, %83, %cst_42 {dimension_numbers = #tpu.dot_dimension_numbers<[1], [0], [0], [1], [0, 0, 1, 1], [], []>} : vector<8x16xf32>, vector<16x256xf32>, vector<8x256xf32> -> vector<8x256xf32>
    %cst_43 = arith.constant dense<0.000000e+00> : vector<8x256xf32>
    %95 = tpu.matmul %12, %91, %cst_43 {dimension_numbers = #tpu.dot_dimension_numbers<[1], [0], [0], [1], [0, 0, 1, 1], [], []>} : vector<8x16xf32>, vector<16x256xf32>, vector<8x256xf32> -> vector<8x256xf32>
    %96 = arith.mulf %94, %95 : vector<8x256xf32>
    %97 = vector.broadcast %69 : vector<8x1xf32> to vector<8x256xf32>
    %98 = arith.addf %96, %97 : vector<8x256xf32>
    %cst_44 = arith.constant 0.000000e+00 : f32
    %99 = vector.broadcast %cst_44 : f32 to vector<8x256xf32>
    %100 = arith.maximumf %98, %99 : vector<8x256xf32>
    %c0_45 = arith.constant 0 : index
    %c0_46 = arith.constant 0 : index
    %c0_47 = arith.constant 0 : index
    %101 = vector.load %arg5[%c0_45, %c0_46, %c0_47] : memref<2x8x256xf32, #tpu.memory_space<vmem>>, vector<1x8x256xf32>
    %102 = vector.shape_cast %101 : vector<1x8x256xf32> to vector<8x256xf32>
    %103 = vector.shape_cast %100 : vector<8x256xf32> to vector<1x8x256xf32>
    tpu.vector_store %arg5[%c0_45, %c0_46, %c0_47], %103 {strides = array<i32>} : memref<2x8x256xf32, #tpu.memory_space<vmem>>, vector<1x8x256xf32>,
    %104 = vector.broadcast %67 : vector<8x1xf32> to vector<8x16xf32>
    %105 = arith.mulf %41, %104 : vector<8x16xf32>
    %cst_48 = arith.constant dense<0.000000e+00> : vector<8x256xf32>
    %106 = tpu.matmul %105, %83, %cst_48 {dimension_numbers = #tpu.dot_dimension_numbers<[1], [0], [0], [1], [0, 0, 1, 1], [], []>} : vector<8x16xf32>, vector<16x256xf32>, vector<8x256xf32> -> vector<8x256xf32>
    %cst_49 = arith.constant dense<0.000000e+00> : vector<8x256xf32>
    %107 = tpu.matmul %36, %91, %cst_49 {dimension_numbers = #tpu.dot_dimension_numbers<[1], [0], [0], [1], [0, 0, 1, 1], [], []>} : vector<8x16xf32>, vector<16x256xf32>, vector<8x256xf32> -> vector<8x256xf32>
    %108 = arith.mulf %106, %107 : vector<8x256xf32>
    %109 = vector.broadcast %69 : vector<8x1xf32> to vector<8x256xf32>
    %110 = arith.addf %108, %109 : vector<8x256xf32>
    %cst_50 = arith.constant 0.000000e+00 : f32
    %111 = vector.broadcast %cst_50 : f32 to vector<8x256xf32>
    %112 = arith.maximumf %110, %111 : vector<8x256xf32>
    %c1_51 = arith.constant 1 : index
    %c0_52 = arith.constant 0 : index
    %c0_53 = arith.constant 0 : index
    %113 = vector.load %arg5[%c1_51, %c0_52, %c0_53] : memref<2x8x256xf32, #tpu.memory_space<vmem>>, vector<1x8x256xf32>
    %114 = vector.shape_cast %113 : vector<1x8x256xf32> to vector<8x256xf32>
    %115 = vector.shape_cast %112 : vector<8x256xf32> to vector<1x8x256xf32>
    tpu.vector_store %arg5[%c1_51, %c0_52, %c0_53], %115 {strides = array<i32>} : memref<2x8x256xf32, #tpu.memory_space<vmem>>, vector<1x8x256xf32>,
    return
  }
}

</mosaic_0001>

<llo_original>
// kernel: tpu_custom_call.1
$region0: #{tpu_custom_call.1}
  #allocation0 [shape = 'u32[]', space=smem, size = 0x4, offset = 0x4, fixed_abs, tag = 'smem constant byte address 0x4 - core index']
  #allocation1 [shape = 'u32[144,128]{1,0:T(1,128)}', space=vmem, size = 0x12000, scoped, tag = 'internal scratch']
  %s0 = inlined_call_operand.vmem [shape: f32[2,64,16], index: 0, kind: input, shape index: {}]
  %s1 = inlined_call_operand.vmem [shape: f32[2,64,16], index: 1, kind: input, shape index: {}]
  %s2 = inlined_call_operand.vmem [shape: f32[8,64], index: 2, kind: input, shape index: {}]
  %s3 = inlined_call_operand.vmem [shape: f32[8,64], index: 3, kind: input, shape index: {}]
  %s4 = inlined_call_operand.vmem [shape: f32[8,4], index: 4, kind: input, shape index: {}]
  %s5 = inlined_call_operand.hbm [shape: f32[2,8,256], index: 5, kind: output, shape index: {}]
  %s6 = sld [smem:[#allocation0]]
  $region30: #{tpu_custom_call.1} parent=0
    _
  %s8 = ssub.s32 1, %s6
  %s9 = scalar_select 0, %s8, %s6
  $region1: #{tpu_custom_call.1} parent=0
    #allocation2 [shape = 'u8[16384]{0}', space=vmem, size = 0x4000, scoped, tag = 'output window, operand 0, single buffered']
    #allocation3 [shape = 's32[1]{0}', space=sflag, size = 0x4, scoped, tag = 'scoped memory for tpu_custom_call.1']
    %10 = vsyncpa [#allocation3], 0
    // Predicated region
    $region2: #{tpu_custom_call.1} parent=1 // pred_check
      _
    $region3: #{tpu_custom_call.1} parent=1 // pred_check_branch
      %12 = sbr.rel (0) target = $region5
    $region4: #{tpu_custom_call.1} parent=1 // pred_region
      _
    $region5: #{tpu_custom_call.1} parent=1 // pred_fallthru
      _
    // Predicated region
    $region6: #{tpu_custom_call.1} parent=1 // pred_check
      _
    $region7: #{tpu_custom_call.1} parent=1 // pred_check_branch
      %14 = sbr.rel (0) target = $region9
    $region8: #{tpu_custom_call.1} parent=1 // pred_region
      _
    $region9: #{tpu_custom_call.1} parent=1 // pred_fallthru
      _
    // Predicated region
    $region10: #{tpu_custom_call.1} parent=1 // pred_check
      _
    $region11: #{tpu_custom_call.1} parent=1 // pred_check_branch
      %16 = sbr.rel (0) target = $region13
    $region12: #{tpu_custom_call.1} parent=1 // pred_region
      _
    $region13: #{tpu_custom_call.1} parent=1 // pred_fallthru
      _
    // Predicated region
    $region14: #{tpu_custom_call.1} parent=1 // pred_check
      _
    $region15: #{tpu_custom_call.1} parent=1 // pred_check_branch
      %18 = sbr.rel (0) target = $region17
    $region16: #{tpu_custom_call.1} parent=1 // pred_region
      _
    $region17: #{tpu_custom_call.1} parent=1 // pred_fallthru
      _
    // Predicated region
    $region18: #{tpu_custom_call.1} parent=1 // pred_check
      _
    $region19: #{tpu_custom_call.1} parent=1 // pred_check_branch
      %20 = sbr.rel (0) target = $region21
    $region20: #{tpu_custom_call.1} parent=1 // pred_region
      _
    $region21: #{tpu_custom_call.1} parent=1 // pred_fallthru
      _
    %v21 = vld [vmem:[%s4] sm:$0xff]
    %v22 = vld [vmem:[%s2] sm:$0xff]
    %v23 = vld [vmem:[%s3] sm:$0xff]
    %v24 = vld [vmem:[%s0] sm:$0xff]
    %v25 = vld [vmem:[%s0 + $0x8] sm:$0xff]
    %v26 = vld [vmem:[%s0 + $0x10] sm:$0xff]
    %v27 = vld [vmem:[%s0 + $0x18] sm:$0xff]
    %v28 = vld [vmem:[%s0 + $0x20] sm:$0xff]
    %v29 = vld [vmem:[%s0 + $0x28] sm:$0xff]
    %v30 = vld [vmem:[%s0 + $0x30] sm:$0xff]
    %v31 = vld [vmem:[%s0 + $0x38] sm:$0xff]
    %33 = vset.pattern.permute.xlu0 0
    %34 = vperm.xlu0 %33, %v21
    %v35 = vpop.permute.xlu0 %34
    %vm37 = vcmask 523264
    %v39 = vsel %vm37, %v22, 0
    %41 = vmatprep.subr.mxu0 0.0
    %42 = vmatpush1.msra.mxu0 0.0
    %43 = vmatprep.subr.mxu0 0.0
    %44 = vmatpush1.msra.mxu0 0.0
    %45 = vmatprep.subr.mxu0 0.0
    %46 = vmatpush1.msra.mxu0 0.0
    %47 = vmatprep.subr.mxu0 0.0
    %48 = vmatpush1.msra.mxu0 0.0
    %49 = vmatprep.subr.mxu0 0.0
    %50 = vmatpush1.msra.mxu0 0.0
    %51 = vmatprep.subr.mxu0 0.0
    %52 = vmatpush1.msra.mxu0 0.0
    %53 = vmatprep.subr.mxu0 0.0
    %54 = vmatpush1.msra.mxu0 0.0
    %55 = vmatprep.subr.mxu0 0.0
    %56 = vmatpush1.msra.mxu0 0.0
    %57 = vmatprep.subr.mxu0 0.0
    %58 = vmatpush1.msra.mxu0 %v31
    %59 = vmatprep.subr.mxu0 0.0
    %60 = vmatpush1.msra.mxu0 %v30
    %61 = vmatprep.subr.mxu0 0.0
    %62 = vmatpush1.msra.mxu0 %v29
    %63 = vmatprep.subr.mxu0 0.0
    %64 = vmatpush1.msra.mxu0 %v28
    %65 = vmatprep.subr.mxu0 0.0
    %66 = vmatpush1.msra.mxu0 %v27
    %67 = vmatprep.subr.mxu0 0.0
    %68 = vmatpush1.msra.mxu0 %v26
    %69 = vmatprep.subr.mxu0 0.0
    %70 = vmatpush1.msra.mxu0 %v25
    %71 = vmatprep.subr.mxu0 0.0
    %72 = vmatpush1.msra.mxu0 %v24
    %73 = vmatprep.subr.mxu0 0.0
    %74 = vmatpush2.msra.mxu0 0.0
    %75 = vmatprep.subr.mxu0 0.0
    %76 = vmatpush2.msra.mxu0 0.0
    %77 = vmatprep.subr.mxu0 0.0
    %78 = vmatpush2.msra.mxu0 0.0
    %79 = vmatprep.subr.mxu0 0.0
    %80 = vmatpush2.msra.mxu0 0.0
    %81 = vmatprep.subr.mxu0 0.0
    %82 = vmatpush2.msra.mxu0 0.0
    %83 = vmatprep.subr.mxu0 0.0
    %84 = vmatpush2.msra.mxu0 0.0
    %85 = vmatprep.subr.mxu0 0.0
    %86 = vmatpush2.msra.mxu0 0.0
    %87 = vmatprep.subr.mxu0 0.0
    %88 = vmatpush2.msra.mxu0 0.0
    %89 = vmatprep.subr.mxu0 0.0
    %90 = vmatpush2.msra.mxu0 0.0
    %91 = vmatprep.subr.mxu0 0.0
    %92 = vmatpush2.msra.mxu0 0.0
    %93 = vmatprep.subr.mxu0 0.0
    %94 = vmatpush2.msra.mxu0 0.0
    %95 = vmatprep.subr.mxu0 0.0
    %96 = vmatpush2.msra.mxu0 0.0
    %97 = vmatprep.subr.mxu0 0.0
    %98 = vmatpush2.msra.mxu0 0.0
    %99 = vmatprep.subr.mxu0 0.0
    %100 = vmatpush2.msra.mxu0 0.0
    %101 = vmatprep.subr.mxu0 0.0
    %102 = vmatpush2.msra.mxu0 0.0
    %103 = vmatprep.subr.mxu0 0.0
    %104 = vmatpush2.msra.mxu0 0.0
    %105 = vmatprep.mubr.f32.mxu0 0.0
    %106 = vmatmul.mubr.f32.gmra.mxu0 %v39
    %v107 = vpop.f32.mrf.mxu0
    %v108 = vadd.f32 %v35, %v107
    %v109 = vpop.f32.mrf.mxu0
    %110 = vdwg.mxu0
    %v111 = vld [vmem:[%s1] sm:$0xff]
    %v112 = vld [vmem:[%s1 + $0x8] sm:$0xff]
    %v113 = vld [vmem:[%s1 + $0x10] sm:$0xff]
    %v114 = vld [vmem:[%s1 + $0x18] sm:$0xff]
    %v115 = vld [vmem:[%s1 + $0x20] sm:$0xff]
    %v116 = vld [vmem:[%s1 + $0x28] sm:$0xff]
    %v117 = vld [vmem:[%s1 + $0x30] sm:$0xff]
    %v118 = vld [vmem:[%s1 + $0x38] sm:$0xff]
    %119 = vset.pattern.permute.xlu0 1
    %120 = vperm.xlu0 %119, %v21
    %v121 = vpop.permute.xlu0 %120
    %v124 = vsel %vm37, %v23, 0
    %126 = vmatprep.subr.mxu0 0.0
    %127 = vmatpush1.msra.mxu0 0.0
    %128 = vmatprep.subr.mxu0 0.0
    %129 = vmatpush1.msra.mxu0 0.0
    %130 = vmatprep.subr.mxu0 0.0
    %131 = vmatpush1.msra.mxu0 0.0
    %132 = vmatprep.subr.mxu0 0.0
    %133 = vmatpush1.msra.mxu0 0.0
    %134 = vmatprep.subr.mxu0 0.0
    %135 = vmatpush1.msra.mxu0 0.0
    %136 = vmatprep.subr.mxu0 0.0
    %137 = vmatpush1.msra.mxu0 0.0
    %138 = vmatprep.subr.mxu0 0.0
    %139 = vmatpush1.msra.mxu0 0.0
    %140 = vmatprep.subr.mxu0 0.0
    %141 = vmatpush1.msra.mxu0 0.0
    %142 = vmatprep.subr.mxu0 0.0
    %143 = vmatpush1.msra.mxu0 %v118
    %144 = vmatprep.subr.mxu0 0.0
    %145 = vmatpush1.msra.mxu0 %v117
    %146 = vmatprep.subr.mxu0 0.0
    %147 = vmatpush1.msra.mxu0 %v116
    %148 = vmatprep.subr.mxu0 0.0
    %149 = vmatpush1.msra.mxu0 %v115
    %150 = vmatprep.subr.mxu0 0.0
    %151 = vmatpush1.msra.mxu0 %v114
    %152 = vmatprep.subr.mxu0 0.0
    %153 = vmatpush1.msra.mxu0 %v113
    %154 = vmatprep.subr.mxu0 0.0
    %155 = vmatpush1.msra.mxu0 %v112
    %156 = vmatprep.subr.mxu0 0.0
    %157 = vmatpush1.msra.mxu0 %v111
    %158 = vmatprep.subr.mxu0 0.0
    %159 = vmatpush2.msra.mxu0 0.0
    %160 = vmatprep.subr.mxu0 0.0
    %161 = vmatpush2.msra.mxu0 0.0
    %162 = vmatprep.subr.mxu0 0.0
    %163 = vmatpush2.msra.mxu0 0.0
    %164 = vmatprep.subr.mxu0 0.0
    %165 = vmatpush2.msra.mxu0 0.0
    %166 = vmatprep.subr.mxu0 0.0
    %167 = vmatpush2.msra.mxu0 0.0
    %168 = vmatprep.subr.mxu0 0.0
    %169 = vmatpush2.msra.mxu0 0.0
    %170 = vmatprep.subr.mxu0 0.0
    %171 = vmatpush2.msra.mxu0 0.0
    %172 = vmatprep.subr.mxu0 0.0
    %173 = vmatpush2.msra.mxu0 0.0
    %174 = vmatprep.subr.mxu0 0.0
    %175 = vmatpush2.msra.mxu0 0.0
    %176 = vmatprep.subr.mxu0 0.0
    %177 = vmatpush2.msra.mxu0 0.0
    %178 = vmatprep.subr.mxu0 0.0
    %179 = vmatpush2.msra.mxu0 0.0
    %180 = vmatprep.subr.mxu0 0.0
    %181 = vmatpush2.msra.mxu0 0.0
    %182 = vmatprep.subr.mxu0 0.0
    %183 = vmatpush2.msra.mxu0 0.0
    %184 = vmatprep.subr.mxu0 0.0
    %185 = vmatpush2.msra.mxu0 0.0
    %186 = vmatprep.subr.mxu0 0.0
    %187 = vmatpush2.msra.mxu0 0.0
    %188 = vmatprep.subr.mxu0 0.0
    %189 = vmatpush2.msra.mxu0 0.0
    %190 = vmatprep.mubr.f32.mxu0 0.0
    %191 = vmatmul.mubr.f32.gmra.mxu0 %v124
    %v192 = vpop.f32.mrf.mxu0
    %v193 = vadd.f32 %v121, %v192
    %v194 = vpop.f32.mrf.mxu0
    %195 = vdwg.mxu0
    %vm196 = vcmask 130048
    %v197 = vsel %vm196, %v108, 0.0
    %198 = vadd.xlane.f32.xlu0 %v197
    %v199 = vpop.xlane.xlu0 %198
    %v200 = vsel %vm196, %v193, 0.0
    %201 = vadd.xlane.f32.xlu0 %v200
    %v202 = vpop.xlane.xlu0 %201
    %v203 = vmul.f32 %v108, %v108
    %v204 = vsel %vm196, %v203, 0.0
    %205 = vadd.xlane.f32.xlu0 %v204
    %v206 = vpop.xlane.xlu0 %205
    %v207 = vmul.f32 %v193, %v193
    %v208 = vsel %vm196, %v207, 0.0
    %209 = vadd.xlane.f32.xlu0 %v208
    %v210 = vpop.xlane.xlu0 %209
    %v211 = vmul.f32 %v199, %v202
    %v212 = vadd.f32 %v211, 0.0
    %v213 = vmul.f32 %v206, %v210
    %v214 = vadd.f32 %v213, 0.0
    %s215 = scalar_lea.vmem %s0, 64
    %v216 = vld [vmem:[%s215] sm:$0xff]
    %v217 = vld [vmem:[%s215 + $0x8] sm:$0xff]
    %v218 = vld [vmem:[%s215 + $0x10] sm:$0xff]
    %v219 = vld [vmem:[%s215 + $0x18] sm:$0xff]
    %v220 = vld [vmem:[%s215 + $0x20] sm:$0xff]
    %v221 = vld [vmem:[%s215 + $0x28] sm:$0xff]
    %v222 = vld [vmem:[%s215 + $0x30] sm:$0xff]
    %v223 = vld [vmem:[%s215 + $0x38] sm:$0xff]
    %224 = vmatprep.subr.mxu0 0.0
    %225 = vmatpush1.msra.mxu0 0.0
    %226 = vmatprep.subr.mxu0 0.0
    %227 = vmatpush1.msra.mxu0 0.0
    %228 = vmatprep.subr.mxu0 0.0
    %229 = vmatpush1.msra.mxu0 0.0
    %230 = vmatprep.subr.mxu0 0.0
    %231 = vmatpush1.msra.mxu0 0.0
    %232 = vmatprep.subr.mxu0 0.0
    %233 = vmatpush1.msra.mxu0 0.0
    %234 = vmatprep.subr.mxu0 0.0
    %235 = vmatpush1.msra.mxu0 0.0
    %236 = vmatprep.subr.mxu0 0.0
    %237 = vmatpush1.msra.mxu0 0.0
    %238 = vmatprep.subr.mxu0 0.0
    %239 = vmatpush1.msra.mxu0 0.0
    %240 = vmatprep.subr.mxu0 0.0
    %241 = vmatpush1.msra.mxu0 %v223
    %242 = vmatprep.subr.mxu0 0.0
    %243 = vmatpush1.msra.mxu0 %v222
    %244 = vmatprep.subr.mxu0 0.0
    %245 = vmatpush1.msra.mxu0 %v221
    %246 = vmatprep.subr.mxu0 0.0
    %247 = vmatpush1.msra.mxu0 %v220
    %248 = vmatprep.subr.mxu0 0.0
    %249 = vmatpush1.msra.mxu0 %v219
    %250 = vmatprep.subr.mxu0 0.0
    %251 = vmatpush1.msra.mxu0 %v218
    %252 = vmatprep.subr.mxu0 0.0
    %253 = vmatpush1.msra.mxu0 %v217
    %254 = vmatprep.subr.mxu0 0.0
    %255 = vmatpush1.msra.mxu0 %v216
    %256 = vmatprep.subr.mxu0 0.0
    %257 = vmatpush2.msra.mxu0 0.0
    %258 = vmatprep.subr.mxu0 0.0
    %259 = vmatpush2.msra.mxu0 0.0
    %260 = vmatprep.subr.mxu0 0.0
    %261 = vmatpush2.msra.mxu0 0.0
    %262 = vmatprep.subr.mxu0 0.0
    %263 = vmatpush2.msra.mxu0 0.0
    %264 = vmatprep.subr.mxu0 0.0
    %265 = vmatpush2.msra.mxu0 0.0
    %266 = vmatprep.subr.mxu0 0.0
    %267 = vmatpush2.msra.mxu0 0.0
    %268 = vmatprep.subr.mxu0 0.0
    %269 = vmatpush2.msra.mxu0 0.0
    %270 = vmatprep.subr.mxu0 0.0
    %271 = vmatpush2.msra.mxu0 0.0
    %272 = vmatprep.subr.mxu0 0.0
    %273 = vmatpush2.msra.mxu0 0.0
    %274 = vmatprep.subr.mxu0 0.0
    %275 = vmatpush2.msra.mxu0 0.0
    %276 = vmatprep.subr.mxu0 0.0
    %277 = vmatpush2.msra.mxu0 0.0
    %278 = vmatprep.subr.mxu0 0.0
    %279 = vmatpush2.msra.mxu0 0.0
    %280 = vmatprep.subr.mxu0 0.0
    %281 = vmatpush2.msra.mxu0 0.0
    %282 = vmatprep.subr.mxu0 0.0
    %283 = vmatpush2.msra.mxu0 0.0
    %284 = vmatprep.subr.mxu0 0.0
    %285 = vmatpush2.msra.mxu0 0.0
    %286 = vmatprep.subr.mxu0 0.0
    %287 = vmatpush2.msra.mxu0 0.0
    %288 = vmatprep.mubr.f32.mxu0 0.0
    %289 = vmatmul.mubr.f32.gmra.mxu0 %v39
    %v290 = vpop.f32.mrf.mxu0
    %v291 = vadd.f32 %v35, %v290
    %v292 = vpop.f32.mrf.mxu0
    %293 = vdwg.mxu0
    %s294 = scalar_lea.vmem %s1, 64
    %v295 = vld [vmem:[%s294] sm:$0xff]
    %v296 = vld [vmem:[%s294 + $0x8] sm:$0xff]
    %v297 = vld [vmem:[%s294 + $0x10] sm:$0xff]
    %v298 = vld [vmem:[%s294 + $0x18] sm:$0xff]
    %v299 = vld [vmem:[%s294 + $0x20] sm:$0xff]
    %v300 = vld [vmem:[%s294 + $0x28] sm:$0xff]
    %v301 = vld [vmem:[%s294 + $0x30] sm:$0xff]
    %v302 = vld [vmem:[%s294 + $0x38] sm:$0xff]
    %303 = vmatprep.subr.mxu0 0.0
    %304 = vmatpush1.msra.mxu0 0.0
    %305 = vmatprep.subr.mxu0 0.0
    %306 = vmatpush1.msra.mxu0 0.0
    %307 = vmatprep.subr.mxu0 0.0
    %308 = vmatpush1.msra.mxu0 0.0
    %309 = vmatprep.subr.mxu0 0.0
    %310 = vmatpush1.msra.mxu0 0.0
    %311 = vmatprep.subr.mxu0 0.0
    %312 = vmatpush1.msra.mxu0 0.0
    %313 = vmatprep.subr.mxu0 0.0
    %314 = vmatpush1.msra.mxu0 0.0
    %315 = vmatprep.subr.mxu0 0.0
    %316 = vmatpush1.msra.mxu0 0.0
    %317 = vmatprep.subr.mxu0 0.0
    %318 = vmatpush1.msra.mxu0 0.0
    %319 = vmatprep.subr.mxu0 0.0
    %320 = vmatpush1.msra.mxu0 %v302
    %321 = vmatprep.subr.mxu0 0.0
    %322 = vmatpush1.msra.mxu0 %v301
    %323 = vmatprep.subr.mxu0 0.0
    %324 = vmatpush1.msra.mxu0 %v300
    %325 = vmatprep.subr.mxu0 0.0
    %326 = vmatpush1.msra.mxu0 %v299
    %327 = vmatprep.subr.mxu0 0.0
    %328 = vmatpush1.msra.mxu0 %v298
    %329 = vmatprep.subr.mxu0 0.0
    %330 = vmatpush1.msra.mxu0 %v297
    %331 = vmatprep.subr.mxu0 0.0
    %332 = vmatpush1.msra.mxu0 %v296
    %333 = vmatprep.subr.mxu0 0.0
    %334 = vmatpush1.msra.mxu0 %v295
    %335 = vmatprep.subr.mxu0 0.0
    %336 = vmatpush2.msra.mxu0 0.0
    %337 = vmatprep.subr.mxu0 0.0
    %338 = vmatpush2.msra.mxu0 0.0
    %339 = vmatprep.subr.mxu0 0.0
    %340 = vmatpush2.msra.mxu0 0.0
    %341 = vmatprep.subr.mxu0 0.0
    %342 = vmatpush2.msra.mxu0 0.0
    %343 = vmatprep.subr.mxu0 0.0
    %344 = vmatpush2.msra.mxu0 0.0
    %345 = vmatprep.subr.mxu0 0.0
    %346 = vmatpush2.msra.mxu0 0.0
    %347 = vmatprep.subr.mxu0 0.0
    %348 = vmatpush2.msra.mxu0 0.0
    %349 = vmatprep.subr.mxu0 0.0
    %350 = vmatpush2.msra.mxu0 0.0
    %351 = vmatprep.subr.mxu0 0.0
    %352 = vmatpush2.msra.mxu0 0.0
    %353 = vmatprep.subr.mxu0 0.0
    %354 = vmatpush2.msra.mxu0 0.0
    %355 = vmatprep.subr.mxu0 0.0
    %356 = vmatpush2.msra.mxu0 0.0
    %357 = vmatprep.subr.mxu0 0.0
    %358 = vmatpush2.msra.mxu0 0.0
    %359 = vmatprep.subr.mxu0 0.0
    %360 = vmatpush2.msra.mxu0 0.0
    %361 = vmatprep.subr.mxu0 0.0
    %362 = vmatpush2.msra.mxu0 0.0
    %363 = vmatprep.subr.mxu0 0.0
    %364 = vmatpush2.msra.mxu0 0.0
    %365 = vmatprep.subr.mxu0 0.0
    %366 = vmatpush2.msra.mxu0 0.0
    %367 = vmatprep.mubr.f32.mxu0 0.0
    %368 = vmatmul.mubr.f32.gmra.mxu0 %v124
    %v369 = vpop.f32.mrf.mxu0
    %v370 = vadd.f32 %v121, %v369
    %v371 = vpop.f32.mrf.mxu0
    %372 = vdwg.mxu0
    %v373 = vsel %vm196, %v291, 0.0
    %374 = vadd.xlane.f32.xlu0 %v373
    %v375 = vpop.xlane.xlu0 %374
    %v376 = vsel %vm196, %v370, 0.0
    %377 = vadd.xlane.f32.xlu0 %v376
    %v378 = vpop.xlane.xlu0 %377
    %v379 = vmul.f32 %v291, %v291
    %v380 = vsel %vm196, %v379, 0.0
    %381 = vadd.xlane.f32.xlu0 %v380
    %v382 = vpop.xlane.xlu0 %381
    %v383 = vmul.f32 %v370, %v370
    %v384 = vsel %vm196, %v383, 0.0
    %385 = vadd.xlane.f32.xlu0 %v384
    %v386 = vpop.xlane.xlu0 %385
    %v387 = vmul.f32 %v375, %v378
    %v388 = vadd.f32 %v212, %v387
    %v389 = vmul.f32 %v382, %v386
    %v390 = vadd.f32 %v214, %v389
    %v391 = vmul.f32 %v388, 0.001953125
    %v392 = vmul.f32 %v390, 0.001953125
    %v393 = vmul.f32 %v391, %v391
    %v394 = vsub.f32 %v392, %v393
    %v395 = vmax.f32 %v394, 0.0
    %v396 = vadd.f32 %v395, 1e-05
    %v397 = vrsqrt.pop %v396
    %v398 = vmul.f32 %v21, %v397
    %v399 = vmul.f32 %v391, %v398
    %401 = vrot.lane.b32.xlu0 %v399, 1
    %v402 = vpop.permute.xlu0 %401
    %v404 = vsub.f32 %v21, %v402
    %v405 = vlaneseq
    %v406 = vand.u32 %v405, 127
    %v407 = vadd.s32 %v406, 128
    %v408 = vlaneseq
    %v409 = vshrl.u32 %v408, 7
    %v410 = vadd.s32 %v409, 8
    %v411 = vmul.u32 %v409, 16
    %v412 = vmul.u32 %v410, 16
    %vm413 = vcmp.ge.s32.totalorder %v406, %v411
    %vm414 = vcmp.ge.s32.totalorder %v407, %v411
    %vm415 = vcmp.ge.s32.totalorder %v406, %v412
    %vm416 = vcmp.ge.s32.totalorder %v407, %v412
    %v417 = vadd.s32 %v409, 1
    %v418 = vadd.s32 %v410, 1
    %v419 = vmul.u32 %v417, 16
    %v420 = vmul.u32 %v418, 16
    %vm421 = vcmp.lt.s32.totalorder %v406, %v419
    %vm422 = vcmp.lt.s32.totalorder %v407, %v419
    %vm423 = vcmp.lt.s32.totalorder %v406, %v420
    %vm424 = vcmp.lt.s32.totalorder %v407, %v420
    %vm425 = vmand %vm413, %vm421
    %vm426 = vmand %vm414, %vm422
    %vm427 = vmand %vm415, %vm423
    %vm428 = vmand %vm416, %vm424
    %v429 = vsel %vm425, 1.0, 0.0
    %v430 = vsel %vm426, 1.0, 0.0
    %v431 = vsel %vm427, 1.0, 0.0
    %v432 = vsel %vm428, 1.0, 0.0
    %v433 = vand.u32 %v406, 15
    %v434 = vand.u32 %v407, 15
    %vm435 = vcmp.eq.s32.totalorder %v433, %v409
    %vm436 = vcmp.eq.s32.totalorder %v434, %v409
    %vm437 = vcmp.eq.s32.totalorder %v433, %v410
    %vm438 = vcmp.eq.s32.totalorder %v434, %v410
    %v439 = vsel %vm435, 1.0, 0.0
    %v440 = vsel %vm436, 1.0, 0.0
    %v441 = vsel %vm437, 1.0, 0.0
    %v442 = vsel %vm438, 1.0, 0.0
    %444 = vset.pattern.permute.xlu0 2
    %445 = vperm.xlu0 %444, %v398
    %v446 = vpop.permute.xlu0 %445
    %v448 = vmul.f32 %v193, %v446
    %v450 = vsel %vm196, %v448, 0
    %452 = vmatprep.subr.mxu0 0.0
    %453 = vmatpush1.msra.mxu0 0.0
    %454 = vmatprep.subr.mxu0 0.0
    %455 = vmatpush1.msra.mxu0 0.0
    %456 = vmatprep.subr.mxu0 0.0
    %457 = vmatpush1.msra.mxu0 0.0
    %458 = vmatprep.subr.mxu0 0.0
    %459 = vmatpush1.msra.mxu0 0.0
    %460 = vmatprep.subr.mxu0 0.0
    %461 = vmatpush1.msra.mxu0 0.0
    %462 = vmatprep.subr.mxu0 0.0
    %463 = vmatpush1.msra.mxu0 0.0
    %464 = vmatprep.subr.mxu0 0.0
    %465 = vmatpush1.msra.mxu0 0.0
    %466 = vmatprep.subr.mxu0 0.0
    %467 = vmatpush1.msra.mxu0 0.0
    %468 = vmatprep.subr.mxu0 0.0
    %469 = vmatpush1.msra.mxu0 0.0
    %470 = vmatprep.subr.mxu0 0.0
    %471 = vmatpush1.msra.mxu0 0.0
    %472 = vmatprep.subr.mxu0 0.0
    %473 = vmatpush1.msra.mxu0 0.0
    %474 = vmatprep.subr.mxu0 0.0
    %475 = vmatpush1.msra.mxu0 0.0
    %476 = vmatprep.subr.mxu0 0.0
    %477 = vmatpush1.msra.mxu0 0.0
    %478 = vmatprep.subr.mxu0 0.0
    %479 = vmatpush1.msra.mxu0 0.0
    %480 = vmatprep.subr.mxu0 %v432
    %481 = vmatpush1.msra.mxu0 %v431
    %482 = vmatprep.subr.mxu0 %v430
    %483 = vmatpush1.msra.mxu0 %v429
    %484 = vmatprep.subr.mxu0 0.0
    %485 = vmatpush2.msra.mxu0 0.0
    %486 = vmatprep.subr.mxu0 0.0
    %487 = vmatpush2.msra.mxu0 0.0
    %488 = vmatprep.subr.mxu0 0.0
    %489 = vmatpush2.msra.mxu0 0.0
    %490 = vmatprep.subr.mxu0 0.0
    %491 = vmatpush2.msra.mxu0 0.0
    %492 = vmatprep.subr.mxu0 0.0
    %493 = vmatpush2.msra.mxu0 0.0
    %494 = vmatprep.subr.mxu0 0.0
    %495 = vmatpush2.msra.mxu0 0.0
    %496 = vmatprep.subr.mxu0 0.0
    %497 = vmatpush2.msra.mxu0 0.0
    %498 = vmatprep.subr.mxu0 0.0
    %499 = vmatpush2.msra.mxu0 0.0
    %500 = vmatprep.subr.mxu0 0.0
    %501 = vmatpush2.msra.mxu0 0.0
    %502 = vmatprep.subr.mxu0 0.0
    %503 = vmatpush2.msra.mxu0 0.0
    %504 = vmatprep.subr.mxu0 0.0
    %505 = vmatpush2.msra.mxu0 0.0
    %506 = vmatprep.subr.mxu0 0.0
    %507 = vmatpush2.msra.mxu0 0.0
    %508 = vmatprep.subr.mxu0 0.0
    %509 = vmatpush2.msra.mxu0 0.0
    %510 = vmatprep.subr.mxu0 0.0
    %511 = vmatpush2.msra.mxu0 0.0
    %512 = vmatprep.subr.mxu0 0.0
    %513 = vmatpush2.msra.mxu0 0.0
    %514 = vmatprep.subr.mxu0 0.0
    %515 = vmatpush2.msra.mxu0 0.0
    %516 = vmatprep.mubr.f32.mxu0 0.0
    %517 = vmatmul.mubr.f32.gmra.mxu0 %v450
    %v518 = vpop.f32.mrf.mxu0
    %v519 = vadd.f32 0.0, %v518
    %v520 = vpop.f32.mrf.mxu0
    %v521 = vadd.f32 0.0, %v520
    %522 = vdwg.mxu0
    %v524 = vsel %vm196, %v108, 0
    %526 = vmatprep.subr.mxu0 0.0
    %527 = vmatpush1.msra.mxu0 0.0
    %528 = vmatprep.subr.mxu0 0.0
    %529 = vmatpush1.msra.mxu0 0.0
    %530 = vmatprep.subr.mxu0 0.0
    %531 = vmatpush1.msra.mxu0 0.0
    %532 = vmatprep.subr.mxu0 0.0
    %533 = vmatpush1.msra.mxu0 0.0
    %534 = vmatprep.subr.mxu0 0.0
    %535 = vmatpush1.msra.mxu0 0.0
    %536 = vmatprep.subr.mxu0 0.0
    %537 = vmatpush1.msra.mxu0 0.0
    %538 = vmatprep.subr.mxu0 0.0
    %539 = vmatpush1.msra.mxu0 0.0
    %540 = vmatprep.subr.mxu0 0.0
    %541 = vmatpush1.msra.mxu0 0.0
    %542 = vmatprep.subr.mxu0 0.0
    %543 = vmatpush1.msra.mxu0 0.0
    %544 = vmatprep.subr.mxu0 0.0
    %545 = vmatpush1.msra.mxu0 0.0
    %546 = vmatprep.subr.mxu0 0.0
    %547 = vmatpush1.msra.mxu0 0.0
    %548 = vmatprep.subr.mxu0 0.0
    %549 = vmatpush1.msra.mxu0 0.0
    %550 = vmatprep.subr.mxu0 0.0
    %551 = vmatpush1.msra.mxu0 0.0
    %552 = vmatprep.subr.mxu0 0.0
    %553 = vmatpush1.msra.mxu0 0.0
    %554 = vmatprep.subr.mxu0 %v442
    %555 = vmatpush1.msra.mxu0 %v441
    %556 = vmatprep.subr.mxu0 %v440
    %557 = vmatpush1.msra.mxu0 %v439
    %558 = vmatprep.subr.mxu0 0.0
    %559 = vmatpush2.msra.mxu0 0.0
    %560 = vmatprep.subr.mxu0 0.0
    %561 = vmatpush2.msra.mxu0 0.0
    %562 = vmatprep.subr.mxu0 0.0
    %563 = vmatpush2.msra.mxu0 0.0
    %564 = vmatprep.subr.mxu0 0.0
    %565 = vmatpush2.msra.mxu0 0.0
    %566 = vmatprep.subr.mxu0 0.0
    %567 = vmatpush2.msra.mxu0 0.0
    %568 = vmatprep.subr.mxu0 0.0
    %569 = vmatpush2.msra.mxu0 0.0
    %570 = vmatprep.subr.mxu0 0.0
    %571 = vmatpush2.msra.mxu0 0.0
    %572 = vmatprep.subr.mxu0 0.0
    %573 = vmatpush2.msra.mxu0 0.0
    %574 = vmatprep.subr.mxu0 0.0
    %575 = vmatpush2.msra.mxu0 0.0
    %576 = vmatprep.subr.mxu0 0.0
    %577 = vmatpush2.msra.mxu0 0.0
    %578 = vmatprep.subr.mxu0 0.0
    %579 = vmatpush2.msra.mxu0 0.0
    %580 = vmatprep.subr.mxu0 0.0
    %581 = vmatpush2.msra.mxu0 0.0
    %582 = vmatprep.subr.mxu0 0.0
    %583 = vmatpush2.msra.mxu0 0.0
    %584 = vmatprep.subr.mxu0 0.0
    %585 = vmatpush2.msra.mxu0 0.0
    %586 = vmatprep.subr.mxu0 0.0
    %587 = vmatpush2.msra.mxu0 0.0
    %588 = vmatprep.subr.mxu0 0.0
    %589 = vmatpush2.msra.mxu0 0.0
    %590 = vmatprep.mubr.f32.mxu0 0.0
    %591 = vmatmul.mubr.f32.gmra.mxu0 %v524
    %v592 = vpop.f32.mrf.mxu0
    %v593 = vadd.f32 0.0, %v592
    %v594 = vpop.f32.mrf.mxu0
    %v595 = vadd.f32 0.0, %v594
    %596 = vdwg.mxu0
    %v597 = vmul.f32 %v519, %v593
    %v598 = vmul.f32 %v521, %v595
    %600 = vset.pattern.permute.xlu0 3
    %601 = vperm.xlu0 %600, %v404
    %v602 = vpop.permute.xlu0 %601
    %v604 = vadd.f32 %v597, %v602
    %v605 = vadd.f32 %v598, %v602
    %v606 = vmax.f32 %v604, 0.0
    %v607 = vmax.f32 %v605, 0.0
    %608 = vst [vmem:[#allocation2] sm:$0xff] %v606
    %609 = vst [vmem:[#allocation2 + $0x8] sm:$0xff] %v607
    %v610 = vmul.f32 %v370, %v446
    %v612 = vsel %vm196, %v610, 0
    %614 = vmatprep.subr.mxu0 0.0
    %615 = vmatpush1.msra.mxu0 0.0
    %616 = vmatprep.subr.mxu0 0.0
    %617 = vmatpush1.msra.mxu0 0.0
    %618 = vmatprep.subr.mxu0 0.0
    %619 = vmatpush1.msra.mxu0 0.0
    %620 = vmatprep.subr.mxu0 0.0
    %621 = vmatpush1.msra.mxu0 0.0
    %622 = vmatprep.subr.mxu0 0.0
    %623 = vmatpush1.msra.mxu0 0.0
    %624 = vmatprep.subr.mxu0 0.0
    %625 = vmatpush1.msra.mxu0 0.0
    %626 = vmatprep.subr.mxu0 0.0
    %627 = vmatpush1.msra.mxu0 0.0
    %628 = vmatprep.subr.mxu0 0.0
    %629 = vmatpush1.msra.mxu0 0.0
    %630 = vmatprep.subr.mxu0 0.0
    %631 = vmatpush1.msra.mxu0 0.0
    %632 = vmatprep.subr.mxu0 0.0
    %633 = vmatpush1.msra.mxu0 0.0
    %634 = vmatprep.subr.mxu0 0.0
    %635 = vmatpush1.msra.mxu0 0.0
    %636 = vmatprep.subr.mxu0 0.0
    %637 = vmatpush1.msra.mxu0 0.0
    %638 = vmatprep.subr.mxu0 0.0
    %639 = vmatpush1.msra.mxu0 0.0
    %640 = vmatprep.subr.mxu0 0.0
    %641 = vmatpush1.msra.mxu0 0.0
    %642 = vmatprep.subr.mxu0 %v432
    %643 = vmatpush1.msra.mxu0 %v431
    %644 = vmatprep.subr.mxu0 %v430
    %645 = vmatpush1.msra.mxu0 %v429
    %646 = vmatprep.subr.mxu0 0.0
    %647 = vmatpush2.msra.mxu0 0.0
    %648 = vmatprep.subr.mxu0 0.0
    %649 = vmatpush2.msra.mxu0 0.0
    %650 = vmatprep.subr.mxu0 0.0
    %651 = vmatpush2.msra.mxu0 0.0
    %652 = vmatprep.subr.mxu0 0.0
    %653 = vmatpush2.msra.mxu0 0.0
    %654 = vmatprep.subr.mxu0 0.0
    %655 = vmatpush2.msra.mxu0 0.0
    %656 = vmatprep.subr.mxu0 0.0
    %657 = vmatpush2.msra.mxu0 0.0
    %658 = vmatprep.subr.mxu0 0.0
    %659 = vmatpush2.msra.mxu0 0.0
    %660 = vmatprep.subr.mxu0 0.0
    %661 = vmatpush2.msra.mxu0 0.0
    %662 = vmatprep.subr.mxu0 0.0
    %663 = vmatpush2.msra.mxu0 0.0
    %664 = vmatprep.subr.mxu0 0.0
    %665 = vmatpush2.msra.mxu0 0.0
    %666 = vmatprep.subr.mxu0 0.0
    %667 = vmatpush2.msra.mxu0 0.0
    %668 = vmatprep.subr.mxu0 0.0
    %669 = vmatpush2.msra.mxu0 0.0
    %670 = vmatprep.subr.mxu0 0.0
    %671 = vmatpush2.msra.mxu0 0.0
    %672 = vmatprep.subr.mxu0 0.0
    %673 = vmatpush2.msra.mxu0 0.0
    %674 = vmatprep.subr.mxu0 0.0
    %675 = vmatpush2.msra.mxu0 0.0
    %676 = vmatprep.subr.mxu0 0.0
    %677 = vmatpush2.msra.mxu0 0.0
    %678 = vmatprep.mubr.f32.mxu0 0.0
    %679 = vmatmul.mubr.f32.gmra.mxu0 %v612
    %v680 = vpop.f32.mrf.mxu0
    %v681 = vadd.f32 0.0, %v680
    %v682 = vpop.f32.mrf.mxu0
    %v683 = vadd.f32 0.0, %v682
    %684 = vdwg.mxu0
    %v686 = vsel %vm196, %v291, 0
    %688 = vmatprep.subr.mxu0 0.0
    %689 = vmatpush1.msra.mxu0 0.0
    %690 = vmatprep.subr.mxu0 0.0
    %691 = vmatpush1.msra.mxu0 0.0
    %692 = vmatprep.subr.mxu0 0.0
    %693 = vmatpush1.msra.mxu0 0.0
    %694 = vmatprep.subr.mxu0 0.0
    %695 = vmatpush1.msra.mxu0 0.0
    %696 = vmatprep.subr.mxu0 0.0
    %697 = vmatpush1.msra.mxu0 0.0
    %698 = vmatprep.subr.mxu0 0.0
    %699 = vmatpush1.msra.mxu0 0.0
    %700 = vmatprep.subr.mxu0 0.0
    %701 = vmatpush1.msra.mxu0 0.0
    %702 = vmatprep.subr.mxu0 0.0
    %703 = vmatpush1.msra.mxu0 0.0
    %704 = vmatprep.subr.mxu0 0.0
    %705 = vmatpush1.msra.mxu0 0.0
    %706 = vmatprep.subr.mxu0 0.0
    %707 = vmatpush1.msra.mxu0 0.0
    %708 = vmatprep.subr.mxu0 0.0
    %709 = vmatpush1.msra.mxu0 0.0
    %710 = vmatprep.subr.mxu0 0.0
    %711 = vmatpush1.msra.mxu0 0.0
    %712 = vmatprep.subr.mxu0 0.0
    %713 = vmatpush1.msra.mxu0 0.0
    %714 = vmatprep.subr.mxu0 0.0
    %715 = vmatpush1.msra.mxu0 0.0
    %716 = vmatprep.subr.mxu0 %v442
    %717 = vmatpush1.msra.mxu0 %v441
    %718 = vmatprep.subr.mxu0 %v440
    %719 = vmatpush1.msra.mxu0 %v439
    %720 = vmatprep.subr.mxu0 0.0
    %721 = vmatpush2.msra.mxu0 0.0
    %722 = vmatprep.subr.mxu0 0.0
    %723 = vmatpush2.msra.mxu0 0.0
    %724 = vmatprep.subr.mxu0 0.0
    %725 = vmatpush2.msra.mxu0 0.0
    %726 = vmatprep.subr.mxu0 0.0
    %727 = vmatpush2.msra.mxu0 0.0
    %728 = vmatprep.subr.mxu0 0.0
    %729 = vmatpush2.msra.mxu0 0.0
    %730 = vmatprep.subr.mxu0 0.0
    %731 = vmatpush2.msra.mxu0 0.0
    %732 = vmatprep.subr.mxu0 0.0
    %733 = vmatpush2.msra.mxu0 0.0
    %734 = vmatprep.subr.mxu0 0.0
    %735 = vmatpush2.msra.mxu0 0.0
    %736 = vmatprep.subr.mxu0 0.0
    %737 = vmatpush2.msra.mxu0 0.0
    %738 = vmatprep.subr.mxu0 0.0
    %739 = vmatpush2.msra.mxu0 0.0
    %740 = vmatprep.subr.mxu0 0.0
    %741 = vmatpush2.msra.mxu0 0.0
    %742 = vmatprep.subr.mxu0 0.0
    %743 = vmatpush2.msra.mxu0 0.0
    %744 = vmatprep.subr.mxu0 0.0
    %745 = vmatpush2.msra.mxu0 0.0
    %746 = vmatprep.subr.mxu0 0.0
    %747 = vmatpush2.msra.mxu0 0.0
    %748 = vmatprep.subr.mxu0 0.0
    %749 = vmatpush2.msra.mxu0 0.0
    %750 = vmatprep.subr.mxu0 0.0
    %751 = vmatpush2.msra.mxu0 0.0
    %752 = vmatprep.mubr.f32.mxu0 0.0
    %753 = vmatmul.mubr.f32.gmra.mxu0 %v686
    %v754 = vpop.f32.mrf.mxu0
    %v755 = vadd.f32 0.0, %v754
    %v756 = vpop.f32.mrf.mxu0
    %v757 = vadd.f32 0.0, %v756
    %758 = vdwg.mxu0
    %v759 = vmul.f32 %v681, %v755
    %v760 = vmul.f32 %v683, %v757
    %v761 = vadd.f32 %v759, %v602
    %v762 = vadd.f32 %v760, %v602
    %v763 = vmax.f32 %v761, 0.0
    %v764 = vmax.f32 %v762, 0.0
    %s765 = scalar_lea.vmem [#allocation2], 16
    %766 = vst [vmem:[%s765] sm:$0xff] %v763
    %767 = vst [vmem:[%s765 + $0x8] sm:$0xff] %v764
    // Predicated region
    $region22: #{tpu_custom_call.1} parent=1 // pred_check
      _
    $region23: #{tpu_custom_call.1} parent=1 // pred_check_branch
      %769 = sbr.rel (0) target = $region25
    $region24: #{tpu_custom_call.1} parent=1 // pred_region
      %s771 = ssub.s32 512, 512
      %772 = vsyncadd [#allocation3], %s771
      %s773 = sshll.u32 [#allocation2], 4
      %s774 = int_to_ptr.vmem [resolvable:$true] %s773
      %779 = dma.vmem_to_hbm [thread:$0]  %s774, 512, %s5, [#allocation3], 256, 256, 16
    $region25: #{tpu_custom_call.1} parent=1 // pred_fallthru
      _
    // Predicated region
    $region26: #{tpu_custom_call.1} parent=1 // pred_check
      _
    $region27: #{tpu_custom_call.1} parent=1 // pred_check_branch
      %781 = sbr.rel (0) target = $region29
    $region28: #{tpu_custom_call.1} parent=1 // pred_region
      %782 = dma.done [#allocation3], 512
    $region29: #{tpu_custom_call.1} parent=1 // pred_fallthru
      _
    %783 = vsyncpa [#allocation3], 1

</llo_original>
